<compile_context>
chip_gen: v6e
topology: v6e:2x2x1
jax: 0.10.0
libtpu: 0.0.40
codegen_flags: <defaults>
</compile_context>

<pallas_src>
import functools

import jax
import jax.numpy as jnp
from jax import lax
from jax.experimental import pallas as pl
from jax.experimental.pallas import tpu as pltpu

_SUBLANES = 8
_LANES = 128
_VREG_ELEMS = _SUBLANES * _LANES  # 1024 elements per (8, 128) super-row


def _ccc_moments_kernel(pred_ref, gt_ref, out_ref,
                        acc_p, acc_g, acc_pp, acc_gg, acc_pg,
                        *, k, chunks, n_super, unroll):
    """Accumulate raw moments of one (k, 8, 128) tile; reduce on the last step."""
    split = pl.program_id(0)
    step = pl.program_id(1)

    @pl.when(step == 0)
    def _init():
        zero = jnp.zeros((_SUBLANES, _LANES), jnp.float32)
        acc_p[...] = zero
        acc_g[...] = zero
        acc_pp[...] = zero
        acc_gg[...] = zero
        acc_pg[...] = zero

    # First global super-row covered by this tile and how many of its k rows
    # are real data.  Rows past n_super come from the clamped / partial
    # last-block DMA (stale VMEM) and must be masked to zero.
    tile_start = (split * chunks + step) * k
    valid_rows = jnp.clip(n_super - tile_start, 0, k)

    def body(r, carry):
        ap, ag, app, agg, apg = carry
        keep = r < valid_rows                      # scalar predicate
        p = pred_ref[r].astype(jnp.float32)        # one (8, 128) super-row
        g = gt_ref[r].astype(jnp.float32)
        p = jnp.where(keep, p, 0.0)
        g = jnp.where(keep, g, 0.0)
        return (ap + p, ag + g, app + p * p, agg + g * g, apg + p * g)

    # Accumulators live in vregs for the whole tile; VMEM scratch is only
    # touched once per grid step (load here, store below).
    init = (acc_p[...], acc_g[...], acc_pp[...], acc_gg[...], acc_pg[...])
    ap, ag, app, agg, apg = lax.fori_loop(0, k, body, init, unroll=unroll)
    acc_p[...] = ap
    acc_g[...] = ag
    acc_pp[...] = app
    acc_gg[...] = agg
    acc_pg[...] = apg

    @pl.when(step == pl.num_programs(1) - 1)
    def _finalize():
        # One full cross-lane reduce per moment, once per split; scatter the
        # five scalars to rows 0..4 of the lane-dense (8, 128) output block.
        row = lax.broadcasted_iota(jnp.int32, (_SUBLANES, _LANES), 0)
        out = jnp.where(row == 0, jnp.sum(ap), 0.0)
        out = out + jnp.where(row == 1, jnp.sum(ag), 0.0)
        out = out + jnp.where(row == 2, jnp.sum(app), 0.0)
        out = out + jnp.where(row == 3, jnp.sum(agg), 0.0)
        out = out + jnp.where(row == 4, jnp.sum(apg), 0.0)
        out_ref[...] = out


def concordance_cc_loss(prediction, ground_truth, *,
                        max_superrows_per_tile=512, num_splits=2):
    """1 - CCC, matching PyTorch ConcordanceCorCoeff.forward for 1-D inputs.

    max_superrows_per_tile=512 -> (512, 8, 128) f32 tile = 2 MiB per input per
    step; with double buffering of both inputs that is 8 MiB, inside default
    scoped VMEM on v5e (16 MiB) / v6e (32 MiB) / v7x (32 MiB).  On v6e this can
    be raised to 1024 for a marginal extra % of HBM roofline.
    num_splits=2 -> leading "parallel" grid axis (both TensorCores on v7x; a
    trivially cheap extra outer iteration on single-TC chips).
    """
    assert prediction.shape == ground_truth.shape
    assert prediction.ndim == 1
    n = prediction.shape[0]
    if n < 2:
        raise ValueError("unbiased variance needs at least 2 elements")

    pred, gt = prediction, ground_truth
    rem = n % _VREG_ELEMS
    if rem:
        # TODO(synk): for misaligned N, replace this full-array pad (extra HBM
        # copy) with a memory_space=pl.ANY manual-DMA path; aligned N (the
        # common large-N case) is already zero-copy below.
        pad = _VREG_ELEMS - rem
        pred = jnp.pad(pred, (0, pad))
        gt = jnp.pad(gt, (0, pad))
    n_super = pred.shape[0] // _VREG_ELEMS

    # Free reshapes of contiguous buffers (no pad, no copy, when rem == 0).
    pred_t = pred.reshape(n_super, _SUBLANES, _LANES)   # native dtype; cast in-kernel
    gt_t = gt.reshape(n_super, _SUBLANES, _LANES)

    k = max(1, min(max_superrows_per_tile, pl.cdiv(n_super, num_splits)))
    num_splits = max(1, min(num_splits, pl.cdiv(n_super, k)))
    chunks = pl.cdiv(n_super, num_splits * k)
    last_block = pl.cdiv(n_super, k) - 1

    # Clamp logical block indices that would land fully past the array (can
    # happen when num_splits*chunks*k over-covers n_super); their rows are
    # masked to zero in-kernel, so re-reading the last block is harmless.
    in_map = lambda c, i: (jnp.minimum(c * chunks + i, last_block), 0, 0)

    kernel = functools.partial(
        _ccc_moments_kernel,
        k=k, chunks=chunks, n_super=n_super, unroll=min(8, k))

    moments = pl.pallas_call(
        kernel,
        out_shape=jax.ShapeDtypeStruct((num_splits, _SUBLANES, _LANES),
                                       jnp.float32),
        grid_spec=pltpu.PrefetchScalarGridSpec(
            num_scalar_prefetch=0,
            grid=(num_splits, chunks),
            in_specs=[
                pl.BlockSpec((k, _SUBLANES, _LANES), in_map),
                pl.BlockSpec((k, _SUBLANES, _LANES), in_map),
            ],
            out_specs=pl.BlockSpec((None, _SUBLANES, _LANES),
                                   lambda c, i: (c, 0, 0)),
            scratch_shapes=[pltpu.VMEM((_SUBLANES, _LANES), jnp.float32)
                            for _ in range(5)],
        ),
        compiler_params=pltpu.CompilerParams(
            dimension_semantics=("parallel", "arbitrary")),
    )(pred_t, gt_t)

    # Combine partial moments across the parallel splits and finish the tiny
    # scalar tail here (a dozen scalar ops).  Zero padding contributed nothing
    # to any raw moment, so the true n is used throughout.
    sums = jnp.sum(moments[:, :5, 0], axis=0)
    sum_p, sum_g, sum_pp, sum_gg, sum_pg = (sums[0], sums[1], sums[2],
                                            sums[3], sums[4])
    nf = jnp.float32(n)
    mean_p = sum_p / nf
    mean_g = sum_g / nf
    # Centered sums from raw moments.
    # TODO(synk): if |mean| >> std in f32, pre-subtract a common offset from
    # both inputs (the loss is invariant to a shared shift) to limit
    # cancellation in the raw-moment form.
    sum_vp2 = sum_pp - sum_p * mean_p
    sum_vg2 = sum_gg - sum_g * mean_g
    sum_cross = sum_pg - sum_p * mean_g
    var_p = sum_vp2 / (nf - 1.0)
    var_g = sum_vg2 / (nf - 1.0)
    # 2*cor*sd_gt*sd_pred == 2*sum_cross/(n-1): sqrt-free and avoids 0/0.
    numerator = 2.0 * sum_cross / (nf - 1.0)
    denominator = var_g + var_p + (mean_g - mean_p) ** 2
    return 1.0 - numerator / denominator


def _reference_loss(prediction, ground_truth):
    # Pure-JAX reference mirroring the PyTorch module exactly.
    p = prediction.astype(jnp.float32)
    g = ground_truth.astype(jnp.float32)
    mean_g = jnp.mean(g)
    mean_p = jnp.mean(p)
    var_g = jnp.var(g, ddof=1)
    var_p = jnp.var(p, ddof=1)
    v_p = p - mean_p
    v_g = g - mean_g
    cor = jnp.sum(v_p * v_g) / (
        jnp.sqrt(jnp.sum(v_p ** 2)) * jnp.sqrt(jnp.sum(v_g ** 2)))
    sd_g = jnp.std(g, ddof=1)
    sd_p = jnp.std(p, ddof=1)
    numerator = 2 * cor * sd_g * sd_p
    denominator = var_g + var_p + (mean_g - mean_p) ** 2
    return 1 - numerator / denominator


if __name__ == "__main__":
    key = jax.random.PRNGKey(0)

    # Case 1: small 1-D regression batch (non-multiple of 1024 -> tail-pad path,
    # single tile, grid (1, 1)).
    k1, k2 = jax.random.split(key)
    n1 = 1000
    gt1 = jax.random.normal(k1, (n1,), dtype=jnp.float32)
    pred1 = 0.8 * gt1 + 0.3 * jax.random.normal(k2, (n1,), dtype=jnp.float32) + 0.1
    loss1 = jax.block_until_ready(concordance_cc_loss(pred1, gt1))
    ref1 = jax.block_until_ready(_reference_loss(pred1, gt1))
    assert jnp.allclose(loss1, ref1, rtol=1e-4, atol=1e-5), (loss1, ref1)

    # Case 2: tiny tile size to exercise multi-step accumulation on both splits,
    # the ragged last block (stale-row masking) and the clamped fully-OOB step.
    k3, k4 = jax.random.split(k2)
    n2 = 9001
    gt2 = jax.random.normal(k3, (n2,), dtype=jnp.float32)
    pred2 = 0.6 * gt2 + 0.5 * jax.random.normal(k4, (n2,), dtype=jnp.float32) - 0.2
    loss2 = jax.block_until_ready(
        concordance_cc_loss(pred2, gt2, max_superrows_per_tile=2))
    ref2 = jax.block_until_ready(_reference_loss(pred2, gt2))
    assert jnp.allclose(loss2, ref2, rtol=1e-4, atol=1e-5), (loss2, ref2)

    # Case 3: 1024-aligned input -> zero-copy fast path (no pad at all), two
    # parallel splits, exact coverage.
    k5, k6 = jax.random.split(k4)
    n3 = 8192
    gt3 = jax.random.normal(k5, (n3,), dtype=jnp.float32)
    pred3 = 0.7 * gt3 + 0.4 * jax.random.normal(k6, (n3,), dtype=jnp.float32) + 0.05
    loss3 = jax.block_until_ready(concordance_cc_loss(pred3, gt3))
    ref3 = jax.block_until_ready(_reference_loss(pred3, gt3))
    assert jnp.allclose(loss3, ref3, rtol=1e-4, atol=1e-5), (loss3, ref3)

    print("KERNEL_OK")
</pallas_src>

<mosaic_0001>
module attributes {stable_mosaic.version = 11 : i64} {
  func.func @_ccc_moments_kernel(%arg0: i32, %arg1: i32, %arg2: memref<1x8x128xf32, #tpu.memory_space<vmem>>, %arg3: memref<1x8x128xf32, #tpu.memory_space<vmem>>, %arg4: memref<1x8x128xf32, #tpu.memory_space<vmem>>, %arg5: memref<8x128xf32, #tpu.memory_space<vmem>>, %arg6: memref<8x128xf32, #tpu.memory_space<vmem>>, %arg7: memref<8x128xf32, #tpu.memory_space<vmem>>, %arg8: memref<8x128xf32, #tpu.memory_space<vmem>>, %arg9: memref<8x128xf32, #tpu.memory_space<vmem>>) attributes {dimension_semantics = [#tpu.dimension_semantics<parallel>, #tpu.dimension_semantics<arbitrary>], iteration_bounds = array<i64: 1, 1>, scalar_prefetch = 0 : i64, scratch_operands = 5 : i64, tpu.core_type = #tpu.core_type<tc>, window_params = [{transform_indices = @transform_0, window_bounds = array<i64: 1, 8, 128>}, {transform_indices = @transform_1, window_bounds = array<i64: 1, 8, 128>}, {transform_indices = @transform_2, window_bounds = array<i64: 1, 8, 128>}]} {
    %c0_i32 = arith.constant 0 : i32
    %0 = arith.cmpi eq, %arg1, %c0_i32 : i32
    %1 = arith.extui %0 : i1 to i32
    %c0_i32_0 = arith.constant 0 : i32
    %2 = arith.cmpi ne, %1, %c0_i32_0 : i32
    scf.if %2 {
      %cst_33 = arith.constant 0.000000e+00 : f32
      %41 = vector.broadcast %cst_33 : f32 to vector<8x128xf32>
      %c0_34 = arith.constant 0 : index
      %c0_35 = arith.constant 0 : index
      %42 = vector.load %arg5[%c0_34, %c0_35] : memref<8x128xf32, #tpu.memory_space<vmem>>, vector<8x128xf32>
      tpu.vector_store %arg5[%c0_34, %c0_35], %41 {strides = array<i32>} : memref<8x128xf32, #tpu.memory_space<vmem>>, vector<8x128xf32>,
      %c0_36 = arith.constant 0 : index
      %c0_37 = arith.constant 0 : index
      %43 = vector.load %arg6[%c0_36, %c0_37] : memref<8x128xf32, #tpu.memory_space<vmem>>, vector<8x128xf32>
      tpu.vector_store %arg6[%c0_36, %c0_37], %41 {strides = array<i32>} : memref<8x128xf32, #tpu.memory_space<vmem>>, vector<8x128xf32>,
      %c0_38 = arith.constant 0 : index
      %c0_39 = arith.constant 0 : index
      %44 = vector.load %arg7[%c0_38, %c0_39] : memref<8x128xf32, #tpu.memory_space<vmem>>, vector<8x128xf32>
      tpu.vector_store %arg7[%c0_38, %c0_39], %41 {strides = array<i32>} : memref<8x128xf32, #tpu.memory_space<vmem>>, vector<8x128xf32>,
      %c0_40 = arith.constant 0 : index
      %c0_41 = arith.constant 0 : index
      %45 = vector.load %arg8[%c0_40, %c0_41] : memref<8x128xf32, #tpu.memory_space<vmem>>, vector<8x128xf32>
      tpu.vector_store %arg8[%c0_40, %c0_41], %41 {strides = array<i32>} : memref<8x128xf32, #tpu.memory_space<vmem>>, vector<8x128xf32>,
      %c0_42 = arith.constant 0 : index
      %c0_43 = arith.constant 0 : index
      %46 = vector.load %arg9[%c0_42, %c0_43] : memref<8x128xf32, #tpu.memory_space<vmem>>, vector<8x128xf32>
      tpu.vector_store %arg9[%c0_42, %c0_43], %41 {strides = array<i32>} : memref<8x128xf32, #tpu.memory_space<vmem>>, vector<8x128xf32>,
    } else {
    }
    %c1_i32 = arith.constant 1 : i32
    %3 = arith.muli %arg0, %c1_i32 : i32
    %4 = arith.addi %3, %arg1 : i32
    %c1_i32_1 = arith.constant 1 : i32
    %5 = arith.muli %4, %c1_i32_1 : i32
    %c1_i32_2 = arith.constant 1 : i32
    %6 = arith.subi %c1_i32_2, %5 : i32
    %c0_i32_3 = arith.constant 0 : i32
    %c1_i32_4 = arith.constant 1 : i32
    %7 = arith.maxsi %c0_i32_3, %6 : i32
    %8 = arith.minsi %c1_i32_4, %7 : i32
    %c0 = arith.constant 0 : index
    %c0_5 = arith.constant 0 : index
    %9 = vector.load %arg5[%c0, %c0_5] : memref<8x128xf32, #tpu.memory_space<vmem>>, vector<8x128xf32>
    %c0_6 = arith.constant 0 : index
    %c0_7 = arith.constant 0 : index
    %10 = vector.load %arg6[%c0_6, %c0_7] : memref<8x128xf32, #tpu.memory_space<vmem>>, vector<8x128xf32>
    %c0_8 = arith.constant 0 : index
    %c0_9 = arith.constant 0 : index
    %11 = vector.load %arg7[%c0_8, %c0_9] : memref<8x128xf32, #tpu.memory_space<vmem>>, vector<8x128xf32>
    %c0_10 = arith.constant 0 : index
    %c0_11 = arith.constant 0 : index
    %12 = vector.load %arg8[%c0_10, %c0_11] : memref<8x128xf32, #tpu.memory_space<vmem>>, vector<8x128xf32>
    %c0_12 = arith.constant 0 : index
    %c0_13 = arith.constant 0 : index
    %13 = vector.load %arg9[%c0_12, %c0_13] : memref<8x128xf32, #tpu.memory_space<vmem>>, vector<8x128xf32>
    %c0_i32_14 = arith.constant 0 : i32
    %14 = arith.cmpi slt, %c0_i32_14, %8 : i32
    %15 = arith.index_cast %c0_i32_14 : i32 to index
    %c0_15 = arith.constant 0 : index
    %c0_16 = arith.constant 0 : index
    %16 = vector.load %arg2[%15, %c0_15, %c0_16] : memref<1x8x128xf32, #tpu.memory_space<vmem>>, vector<1x8x128xf32>
    %17 = vector.shape_cast %16 : vector<1x8x128xf32> to vector<8x128xf32>
    %18 = arith.index_cast %c0_i32_14 : i32 to index
    %c0_17 = arith.constant 0 : index
    %c0_18 = arith.constant 0 : index
    %19 = vector.load %arg3[%18, %c0_17, %c0_18] : memref<1x8x128xf32, #tpu.memory_space<vmem>>, vector<1x8x128xf32>
    %20 = vector.shape_cast %19 : vector<1x8x128xf32> to vector<8x128xf32>
    %cst = arith.constant 0.000000e+00 : f32
    %21 = vector.broadcast %cst : f32 to vector<8x128xf32>
    %22 = arith.select %14, %17, %21 : vector<8x128xf32>
    %cst_19 = arith.constant 0.000000e+00 : f32
    %23 = vector.broadcast %cst_19 : f32 to vector<8x128xf32>
    %24 = arith.select %14, %20, %23 : vector<8x128xf32>
    %25 = arith.addf %9, %22 : vector<8x128xf32>
    %26 = arith.addf %10, %24 : vector<8x128xf32>
    %27 = arith.mulf %22, %22 : vector<8x128xf32>
    %28 = arith.addf %11, %27 : vector<8x128xf32>
    %29 = arith.mulf %24, %24 : vector<8x128xf32>
    %30 = arith.addf %12, %29 : vector<8x128xf32>
    %31 = arith.mulf %22, %24 : vector<8x128xf32>
    %32 = arith.addf %13, %31 : vector<8x128xf32>
    %c1_i32_20 = arith.constant 1 : i32
    %c0_21 = arith.constant 0 : index
    %c0_22 = arith.constant 0 : index
    %33 = vector.load %arg5[%c0_21, %c0_22] : memref<8x128xf32, #tpu.memory_space<vmem>>, vector<8x128xf32>
    tpu.vector_store %arg5[%c0_21, %c0_22], %25 {strides = array<i32>} : memref<8x128xf32, #tpu.memory_space<vmem>>, vector<8x128xf32>,
    %c0_23 = arith.constant 0 : index
    %c0_24 = arith.constant 0 : index
    %34 = vector.load %arg6[%c0_23, %c0_24] : memref<8x128xf32, #tpu.memory_space<vmem>>, vector<8x128xf32>
    tpu.vector_store %arg6[%c0_23, %c0_24], %26 {strides = array<i32>} : memref<8x128xf32, #tpu.memory_space<vmem>>, vector<8x128xf32>,
    %c0_25 = arith.constant 0 : index
    %c0_26 = arith.constant 0 : index
    %35 = vector.load %arg7[%c0_25, %c0_26] : memref<8x128xf32, #tpu.memory_space<vmem>>, vector<8x128xf32>
    tpu.vector_store %arg7[%c0_25, %c0_26], %28 {strides = array<i32>} : memref<8x128xf32, #tpu.memory_space<vmem>>, vector<8x128xf32>,
    %c0_27 = arith.constant 0 : index
    %c0_28 = arith.constant 0 : index
    %36 = vector.load %arg8[%c0_27, %c0_28] : memref<8x128xf32, #tpu.memory_space<vmem>>, vector<8x128xf32>
    tpu.vector_store %arg8[%c0_27, %c0_28], %30 {strides = array<i32>} : memref<8x128xf32, #tpu.memory_space<vmem>>, vector<8x128xf32>,
    %c0_29 = arith.constant 0 : index
    %c0_30 = arith.constant 0 : index
    %37 = vector.load %arg9[%c0_29, %c0_30] : memref<8x128xf32, #tpu.memory_space<vmem>>, vector<8x128xf32>
    tpu.vector_store %arg9[%c0_29, %c0_30], %32 {strides = array<i32>} : memref<8x128xf32, #tpu.memory_space<vmem>>, vector<8x128xf32>,
    %c0_i32_31 = arith.constant 0 : i32
    %38 = arith.cmpi eq, %arg1, %c0_i32_31 : i32
    %39 = arith.extui %38 : i1 to i32
    %c0_i32_32 = arith.constant 0 : i32
    %40 = arith.cmpi ne, %39, %c0_i32_32 : i32
    scf.if %40 {
      %41 = tpu.iota {dimensions = array<i32: 0>} : vector<8x128xi32>
      %c0_i32_33 = arith.constant 0 : i32
      %42 = vector.broadcast %c0_i32_33 : i32 to vector<8x128xi32>
      %43 = arith.cmpi eq, %41, %42 : vector<8x128xi32>
      %44 = vector.shape_cast %25 : vector<8x128xf32> to vector<1x8x128xf32>
      %cst_34 = arith.constant dense<0.000000e+00> : vector<1xf32>
      %45 = vector.multi_reduction <add>, %44, %cst_34 [1, 2] : vector<1x8x128xf32> to vector<1xf32>
      %46 = vector.shape_cast %45 : vector<1xf32> to vector<1x1x1xf32>
      %47 = vector.extract %46[0, 0, 0] : f32 from vector<1x1x1xf32>
      %cst_35 = arith.constant 0.000000e+00 : f32
      %48 = vector.broadcast %47 : f32 to vector<8x128xf32>
      %49 = vector.broadcast %cst_35 : f32 to vector<8x128xf32>
      %50 = arith.select %43, %48, %49 : vector<8x128xi1>, vector<8x128xf32>
      %c1_i32_36 = arith.constant 1 : i32
      %51 = vector.broadcast %c1_i32_36 : i32 to vector<8x128xi32>
      %52 = arith.cmpi eq, %41, %51 : vector<8x128xi32>
      %53 = vector.shape_cast %26 : vector<8x128xf32> to vector<1x8x128xf32>
      %cst_37 = arith.constant dense<0.000000e+00> : vector<1xf32>
      %54 = vector.multi_reduction <add>, %53, %cst_37 [1, 2] : vector<1x8x128xf32> to vector<1xf32>
      %55 = vector.shape_cast %54 : vector<1xf32> to vector<1x1x1xf32>
      %56 = vector.extract %55[0, 0, 0] : f32 from vector<1x1x1xf32>
      %cst_38 = arith.constant 0.000000e+00 : f32
      %57 = vector.broadcast %56 : f32 to vector<8x128xf32>
      %58 = vector.broadcast %cst_38 : f32 to vector<8x128xf32>
      %59 = arith.select %52, %57, %58 : vector<8x128xi1>, vector<8x128xf32>
      %60 = arith.addf %50, %59 : vector<8x128xf32>
      %c2_i32 = arith.constant 2 : i32
      %61 = vector.broadcast %c2_i32 : i32 to vector<8x128xi32>
      %62 = arith.cmpi eq, %41, %61 : vector<8x128xi32>
      %63 = vector.shape_cast %28 : vector<8x128xf32> to vector<1x8x128xf32>
      %cst_39 = arith.constant dense<0.000000e+00> : vector<1xf32>
      %64 = vector.multi_reduction <add>, %63, %cst_39 [1, 2] : vector<1x8x128xf32> to vector<1xf32>
      %65 = vector.shape_cast %64 : vector<1xf32> to vector<1x1x1xf32>
      %66 = vector.extract %65[0, 0, 0] : f32 from vector<1x1x1xf32>
      %cst_40 = arith.constant 0.000000e+00 : f32
      %67 = vector.broadcast %66 : f32 to vector<8x128xf32>
      %68 = vector.broadcast %cst_40 : f32 to vector<8x128xf32>
      %69 = arith.select %62, %67, %68 : vector<8x128xi1>, vector<8x128xf32>
      %70 = arith.addf %60, %69 : vector<8x128xf32>
      %c3_i32 = arith.constant 3 : i32
      %71 = vector.broadcast %c3_i32 : i32 to vector<8x128xi32>
      %72 = arith.cmpi eq, %41, %71 : vector<8x128xi32>
      %73 = vector.shape_cast %30 : vector<8x128xf32> to vector<1x8x128xf32>
      %cst_41 = arith.constant dense<0.000000e+00> : vector<1xf32>
      %74 = vector.multi_reduction <add>, %73, %cst_41 [1, 2] : vector<1x8x128xf32> to vector<1xf32>
      %75 = vector.shape_cast %74 : vector<1xf32> to vector<1x1x1xf32>
      %76 = vector.extract %75[0, 0, 0] : f32 from vector<1x1x1xf32>
      %cst_42 = arith.constant 0.000000e+00 : f32
      %77 = vector.broadcast %76 : f32 to vector<8x128xf32>
      %78 = vector.broadcast %cst_42 : f32 to vector<8x128xf32>
      %79 = arith.select %72, %77, %78 : vector<8x128xi1>, vector<8x128xf32>
      %80 = arith.addf %70, %79 : vector<8x128xf32>
      %c4_i32 = arith.constant 4 : i32
      %81 = vector.broadcast %c4_i32 : i32 to vector<8x128xi32>
      %82 = arith.cmpi eq, %41, %81 : vector<8x128xi32>
      %83 = vector.shape_cast %32 : vector<8x128xf32> to vector<1x8x128xf32>
      %cst_43 = arith.constant dense<0.000000e+00> : vector<1xf32>
      %84 = vector.multi_reduction <add>, %83, %cst_43 [1, 2] : vector<1x8x128xf32> to vector<1xf32>
      %85 = vector.shape_cast %84 : vector<1xf32> to vector<1x1x1xf32>
      %86 = vector.extract %85[0, 0, 0] : f32 from vector<1x1x1xf32>
      %cst_44 = arith.constant 0.000000e+00 : f32
      %87 = vector.broadcast %86 : f32 to vector<8x128xf32>
      %88 = vector.broadcast %cst_44 : f32 to vector<8x128xf32>
      %89 = arith.select %82, %87, %88 : vector<8x128xi1>, vector<8x128xf32>
      %90 = arith.addf %80, %89 : vector<8x128xf32>
      %c0_45 = arith.constant 0 : index
      %c0_46 = arith.constant 0 : index
      %c0_47 = arith.constant 0 : index
      %91 = vector.load %arg4[%c0_45, %c0_46, %c0_47] : memref<1x8x128xf32, #tpu.memory_space<vmem>>, vector<1x8x128xf32>
      %92 = vector.shape_cast %91 : vector<1x8x128xf32> to vector<8x128xf32>
      %93 = vector.shape_cast %90 : vector<8x128xf32> to vector<1x8x128xf32>
      tpu.vector_store %arg4[%c0_45, %c0_46, %c0_47], %93 {strides = array<i32>} : memref<1x8x128xf32, #tpu.memory_space<vmem>>, vector<1x8x128xf32>,
    } else {
    }
    return
  }
  func.func @transform_0(%arg0: i32, %arg1: i32) -> (i32, i32, i32) {
    %c1_i32 = arith.constant 1 : i32
    %0 = arith.muli %arg0, %c1_i32 : i32
    %1 = arith.addi %0, %arg1 : i32
    %c0_i32 = arith.constant 0 : i32
    %2 = arith.minsi %1, %c0_i32 : i32
    %c0_i32_0 = arith.constant 0 : i32
    %c0_i32_1 = arith.constant 0 : i32
    %c0_i32_2 = arith.constant 0 : i32
    return %2, %c0_i32_0, %c0_i32_1 : i32, i32, i32
  }
  func.func @transform_1(%arg0: i32, %arg1: i32) -> (i32, i32, i32) {
    %c1_i32 = arith.constant 1 : i32
    %0 = arith.muli %arg0, %c1_i32 : i32
    %1 = arith.addi %0, %arg1 : i32
    %c0_i32 = arith.constant 0 : i32
    %2 = arith.minsi %1, %c0_i32 : i32
    %c0_i32_0 = arith.constant 0 : i32
    %c0_i32_1 = arith.constant 0 : i32
    %c0_i32_2 = arith.constant 0 : i32
    return %2, %c0_i32_0, %c0_i32_1 : i32, i32, i32
  }
  func.func @transform_2(%arg0: i32, %arg1: i32) -> (i32, i32, i32) {
    %c0_i32 = arith.constant 0 : i32
    %c0_i32_0 = arith.constant 0 : i32
    %c0_i32_1 = arith.constant 0 : i32
    return %arg0, %c0_i32, %c0_i32_0 : i32, i32, i32
  }
}

</mosaic_0001>

<llo_original>
// kernel: tpu_custom_call.1
$region0: #{tpu_custom_call.1}
  #allocation0 [shape = 'u32[]', space=smem, size = 0x4, offset = 0x4, fixed_abs, tag = 'smem constant byte address 0x4 - core index']
  #allocation1 [shape = 'u32[144,128]{1,0:T(1,128)}', space=vmem, size = 0x12000, scoped, tag = 'internal scratch']
  #allocation2 [shape = 'f32[8,128]{1,0:T(8,128)}', space=vmem, size = 0x1000, scoped, tag = 'scratch operand']
  #allocation3 [shape = 'f32[8,128]{1,0:T(8,128)}', space=vmem, size = 0x1000, scoped, tag = 'scratch operand']
  #allocation4 [shape = 'f32[8,128]{1,0:T(8,128)}', space=vmem, size = 0x1000, scoped, tag = 'scratch operand']
  #allocation5 [shape = 'f32[8,128]{1,0:T(8,128)}', space=vmem, size = 0x1000, scoped, tag = 'scratch operand']
  #allocation6 [shape = 'f32[8,128]{1,0:T(8,128)}', space=vmem, size = 0x1000, scoped, tag = 'scratch operand']
  %s0 = inlined_call_operand.hbm [shape: f32[1,8,128], index: 0, kind: input, shape index: {}]
  %s1 = inlined_call_operand.hbm [shape: f32[1,8,128], index: 1, kind: input, shape index: {}]
  %s2 = inlined_call_operand.hbm [shape: f32[1,8,128], index: 2, kind: output, shape index: {}]
  %s3 = sld [smem:[#allocation0]]
  $region34: #{tpu_custom_call.1} parent=0
    _
  %s5 = ssub.s32 1, %s3
  %s6 = scalar_select 0, %s5, %s3
  $region1: #{tpu_custom_call.1} parent=0
    #allocation7 [shape = 'u8[4096]{0}', space=vmem, size = 0x1000, scoped, tag = 'input window, operand 0, single buffered']
    #allocation8 [shape = 's32[1]{0}', space=sflag, size = 0x4, scoped, tag = 'scoped memory for tpu_custom_call.1']
    #allocation9 [shape = 's32[1]{0}', space=sflag, size = 0x4, scoped, tag = 'scoped memory for tpu_custom_call.1']
    #allocation10 [shape = 'u8[4096]{0}', space=vmem, size = 0x1000, scoped, tag = 'input window, operand 1, single buffered']
    #allocation11 [shape = 's32[1]{0}', space=sflag, size = 0x4, scoped, tag = 'scoped memory for tpu_custom_call.1']
    #allocation12 [shape = 'u8[4096]{0}', space=vmem, size = 0x1000, scoped, tag = 'output window, operand 0, single buffered']
    %7 = vsyncpa [#allocation8], 0
    %8 = vsyncpa [#allocation11], 0
    %9 = vsyncpa [#allocation9], 0
    // Predicated region
    $region2: #{tpu_custom_call.1} parent=1 // pred_check
      _
    $region3: #{tpu_custom_call.1} parent=1 // pred_check_branch
      %11 = sbr.rel (0) target = $region5
    $region4: #{tpu_custom_call.1} parent=1 // pred_region
      %s12 = sadd.s32 0, 0
      %p13 = scmp.lt.s32.totalorder %s12, 0
      %s14 = scalar_select %p13, %s12, 0
      %s16 = ssub.s32 128, 128
      %17 = vsyncadd [#allocation8], %s16
      %s18 = smul.addr %s14, 128
      %s19 = scalar_lea.hbm %s0, %s18
      %s21 = sshll.u32 [#allocation7], 4
      %s22 = int_to_ptr.vmem [resolvable:$true] %s21
      %24 = dma.hbm_to_vmem [thread:$0]  %s19, 128, %s22, [#allocation8]
    $region5: #{tpu_custom_call.1} parent=1 // pred_fallthru
      _
    // Predicated region
    $region6: #{tpu_custom_call.1} parent=1 // pred_check
      _
    $region7: #{tpu_custom_call.1} parent=1 // pred_check_branch
      %26 = sbr.rel (0) target = $region9
    $region8: #{tpu_custom_call.1} parent=1 // pred_region
      %s27 = sadd.s32 0, 0
      %p28 = scmp.lt.s32.totalorder %s27, 0
      %s29 = scalar_select %p28, %s27, 0
      %s31 = ssub.s32 128, 128
      %32 = vsyncadd [#allocation11], %s31
      %s33 = smul.addr %s29, 128
      %s34 = scalar_lea.hbm %s1, %s33
      %s36 = sshll.u32 [#allocation10], 4
      %s37 = int_to_ptr.vmem [resolvable:$true] %s36
      %39 = dma.hbm_to_vmem [thread:$0]  %s34, 128, %s37, [#allocation11]
    $region9: #{tpu_custom_call.1} parent=1 // pred_fallthru
      _
    // Predicated region
    $region10: #{tpu_custom_call.1} parent=1 // pred_check
      _
    $region11: #{tpu_custom_call.1} parent=1 // pred_check_branch
      %41 = sbr.rel (0) target = $region13
    $region12: #{tpu_custom_call.1} parent=1 // pred_region
      %42 = dma.done [#allocation8], 128
    $region13: #{tpu_custom_call.1} parent=1 // pred_fallthru
      _
    // Predicated region
    $region14: #{tpu_custom_call.1} parent=1 // pred_check
      _
    $region15: #{tpu_custom_call.1} parent=1 // pred_check_branch
      %44 = sbr.rel (0) target = $region17
    $region16: #{tpu_custom_call.1} parent=1 // pred_region
      %45 = dma.done [#allocation11], 128
    $region17: #{tpu_custom_call.1} parent=1 // pred_fallthru
      _
    %s46 = sadd.s32 0, 0
    %p47 = scmp.lt.s32.totalorder %s46, 0
    %s48 = scalar_select %p47, %s46, 0
    %s49 = sadd.s32 0, 0
    %p50 = scmp.lt.s32.totalorder %s49, 0
    %s51 = scalar_select %p50, %s49, 0
    %p52 = scmp.eq.s32.totalorder 0, 0
    // Predicated region
    $region18: #{tpu_custom_call.1} parent=1 // pred_check
      %p53 = pneg %p52
    $region19: #{tpu_custom_call.1} parent=1 // pred_check_branch
      %55 = sbr.rel (%p53) target = $region21
    $region20: #{tpu_custom_call.1} parent=1 // pred_region
      %56 = vst [vmem:[#allocation2] sm:$0xff] 0.0
      %57 = vst [vmem:[#allocation3] sm:$0xff] 0.0
      %58 = vst [vmem:[#allocation4] sm:$0xff] 0.0
      %59 = vst [vmem:[#allocation5] sm:$0xff] 0.0
      %60 = vst [vmem:[#allocation6] sm:$0xff] 0.0
    $region21: #{tpu_custom_call.1} parent=1 // pred_fallthru
      _
    %s61 = sadd.s32 0, 0
    %s62 = ssub.s32 1, %s61
    %p63 = scmp.gt.s32.totalorder %s62, 0
    %s64 = scalar_select %p63, %s62, 0
    %p65 = scmp.lt.s32.totalorder %s64, 1
    %s66 = scalar_select %p65, %s64, 1
    %v67 = vld [vmem:[#allocation2] sm:$0xff]
    %v68 = vld [vmem:[#allocation3] sm:$0xff]
    %v69 = vld [vmem:[#allocation4] sm:$0xff]
    %v70 = vld [vmem:[#allocation5] sm:$0xff]
    %v71 = vld [vmem:[#allocation6] sm:$0xff]
    %p72 = scmp.gt.s32.totalorder %s66, 0
    %v73 = vld [vmem:[#allocation7] sm:$0xff]
    %v74 = vld [vmem:[#allocation10] sm:$0xff]
    %s75 = scalar_select %p72, 1, 0
    %v76 = vstv %s75
    %vm77 = vcmp.eq.s32.totalorder %v76, 1
    %v78 = vsel %vm77, %v73, 0.0
    %v79 = vsel %vm77, %v74, 0.0
    %v80 = vadd.f32 %v67, %v78
    %v81 = vadd.f32 %v68, %v79
    %v82 = vmul.f32 %v78, %v78
    %v83 = vadd.f32 %v69, %v82
    %v84 = vmul.f32 %v79, %v79
    %v85 = vadd.f32 %v70, %v84
    %v86 = vmul.f32 %v78, %v79
    %v87 = vadd.f32 %v71, %v86
    %88 = vst [vmem:[#allocation2] sm:$0xff] %v80
    %89 = vst [vmem:[#allocation3] sm:$0xff] %v81
    %90 = vst [vmem:[#allocation4] sm:$0xff] %v83
    %91 = vst [vmem:[#allocation5] sm:$0xff] %v85
    %92 = vst [vmem:[#allocation6] sm:$0xff] %v87
    // Predicated region
    $region22: #{tpu_custom_call.1} parent=1 // pred_check
      %p93 = pneg %p52
    $region23: #{tpu_custom_call.1} parent=1 // pred_check_branch
      %95 = sbr.rel (%p93) target = $region25
    $region24: #{tpu_custom_call.1} parent=1 // pred_region
      %v96 = vlaneseq
      %v97 = vshrl.u32 %v96, 7
      %vm98 = vcmp.eq.s32.totalorder %v97, 0
      %99 = vadd.xlane.f32.xlu0 %v80
      %v100 = vpop.xlane.xlu0 %99
      %v101 = vrot.slane %v100, 4
      %v102 = vadd.f32 %v100, %v101
      %v103 = vrot.slane %v102, 2
      %v104 = vadd.f32 %v102, %v103
      %v105 = vrot.slane %v104, 1
      %v106 = vadd.f32 %v104, %v105
      %s107 = vtos %v106
      %v108 = vstv %s107
      %v109 = vsel %vm98, %v108, 0.0
      %vm110 = vcmp.eq.s32.totalorder %v97, 1
      %111 = vadd.xlane.f32.xlu0 %v81
      %v112 = vpop.xlane.xlu0 %111
      %v113 = vrot.slane %v112, 4
      %v114 = vadd.f32 %v112, %v113
      %v115 = vrot.slane %v114, 2
      %v116 = vadd.f32 %v114, %v115
      %v117 = vrot.slane %v116, 1
      %v118 = vadd.f32 %v116, %v117
      %s119 = vtos %v118
      %v120 = vstv %s119
      %v121 = vsel %vm110, %v120, 0.0
      %v122 = vadd.f32 %v109, %v121
      %vm123 = vcmp.eq.s32.totalorder %v97, 2
      %124 = vadd.xlane.f32.xlu0 %v83
      %v125 = vpop.xlane.xlu0 %124
      %v126 = vrot.slane %v125, 4
      %v127 = vadd.f32 %v125, %v126
      %v128 = vrot.slane %v127, 2
      %v129 = vadd.f32 %v127, %v128
      %v130 = vrot.slane %v129, 1
      %v131 = vadd.f32 %v129, %v130
      %s132 = vtos %v131
      %v133 = vstv %s132
      %v134 = vsel %vm123, %v133, 0.0
      %v135 = vadd.f32 %v122, %v134
      %vm136 = vcmp.eq.s32.totalorder %v97, 3
      %137 = vadd.xlane.f32.xlu0 %v85
      %v138 = vpop.xlane.xlu0 %137
      %v139 = vrot.slane %v138, 4
      %v140 = vadd.f32 %v138, %v139
      %v141 = vrot.slane %v140, 2
      %v142 = vadd.f32 %v140, %v141
      %v143 = vrot.slane %v142, 1
      %v144 = vadd.f32 %v142, %v143
      %s145 = vtos %v144
      %v146 = vstv %s145
      %v147 = vsel %vm136, %v146, 0.0
      %v148 = vadd.f32 %v135, %v147
      %vm149 = vcmp.eq.s32.totalorder %v97, 4
      %150 = vadd.xlane.f32.xlu0 %v87
      %v151 = vpop.xlane.xlu0 %150
      %v152 = vrot.slane %v151, 4
      %v153 = vadd.f32 %v151, %v152
      %v154 = vrot.slane %v153, 2
      %v155 = vadd.f32 %v153, %v154
      %v156 = vrot.slane %v155, 1
      %v157 = vadd.f32 %v155, %v156
      %s158 = vtos %v157
      %v159 = vstv %s158
      %v160 = vsel %vm149, %v159, 0.0
      %v161 = vadd.f32 %v148, %v160
      %162 = vst [vmem:[#allocation12] sm:$0xff] %v161
    $region25: #{tpu_custom_call.1} parent=1 // pred_fallthru
      _
    // Predicated region
    $region26: #{tpu_custom_call.1} parent=1 // pred_check
      _
    $region27: #{tpu_custom_call.1} parent=1 // pred_check_branch
      %164 = sbr.rel (0) target = $region29
    $region28: #{tpu_custom_call.1} parent=1 // pred_region
      %s166 = ssub.s32 128, 128
      %167 = vsyncadd [#allocation9], %s166
      %s169 = sshll.u32 [#allocation12], 4
      %s170 = int_to_ptr.vmem [resolvable:$true] %s169
      %172 = dma.vmem_to_hbm [thread:$0]  %s170, 128, %s2, [#allocation9]
    $region29: #{tpu_custom_call.1} parent=1 // pred_fallthru
      _
    // Predicated region
    $region30: #{tpu_custom_call.1} parent=1 // pred_check
      _
    $region31: #{tpu_custom_call.1} parent=1 // pred_check_branch
      %174 = sbr.rel (0) target = $region33
    $region32: #{tpu_custom_call.1} parent=1 // pred_region
      %175 = dma.done [#allocation9], 128
    $region33: #{tpu_custom_call.1} parent=1 // pred_fallthru
      _
    %176 = vsyncpa [#allocation8], 1
    %177 = vsyncpa [#allocation11], 1
    %178 = vsyncpa [#allocation9], 1

</llo_original>
